<compile_context>
chip_gen: v5e
topology: v5e:2x2
jax: 0.10.0
libtpu: 0.0.40
codegen_flags: <defaults>
</compile_context>

<pallas_src>
import jax
import jax.numpy as jnp
from jax import lax
from jax.experimental import pallas as pl
from jax.experimental.pallas import tpu as pltpu


def _round_up(x, m):
    return (x + m - 1) // m * m


def _make_kernel(H, W, TH, WP, Cin, Cout, proj):
    """Kernel body for static image height H, width W, row tile TH, padded width WP."""
    E1 = TH + 3              # conv1 rows: TH+2 useful extended rows + 1 slack row
    L1 = E1 * WP             # conv1 flat extent
    L2 = TH * WP             # tile / output flat extent

    def taps(src, length, base_off):
        # Nine contiguous flat slices (channels, length): tap (dy, dx) starts at
        # base_off + dy*WP + dx.  Row-boundary "wrap" only ever touches garbage
        # columns (real col >= W), which are masked / sliced away later.
        return jnp.concatenate(
            [src[:, base_off + dy * WP + dx: base_off + dy * WP + dx + length]
             for dy in range(3) for dx in range(3)], axis=0)

    def kernel(al_ref, emap_ref, xc_ref, xt_ref, w1_ref, b1_ref, w2_ref, b2_ref, *rest):
        if proj:
            wp_ref, bp_ref, o_ref = rest
        else:
            (o_ref,) = rest

        r = pl.program_id(1)

        # (Cin, (TH+8)*WP) input window = TH*WP centre + 8*WP halo/tail rows.
        xw = jnp.concatenate([xc_ref[0], xt_ref[0]], axis=-1)
        cdt = xw.dtype
        # TODO(synk): scalar PReLU only (nn.PReLU default); a per-channel alpha
        # would need a (C, 1) broadcast along the sublane axis here.
        a1 = al_ref[0].astype(cdt)
        a2 = al_ref[1]

        # PReLU #1 (PReLU(0) == 0, so the zero-padding ring stays valid).
        s = jnp.where(xw >= 0, xw, a1 * xw)

        # conv1 on the extended region as ONE transposed matmul:
        #   (Cout, 9*Cin) @ (9*Cin, L1) -> (Cout, L1), f32 accumulation.
        h = jnp.dot(w1_ref[...], taps(s, L1, 0),
                    preferred_element_type=jnp.float32) + b1_ref[...]
        h = jnp.where(h >= 0, h, a2 * h)                      # PReLU #2

        # Emulate conv2's zero padding: zero everything outside the real image.
        # emap holds the extended-row index per flat position (large negative
        # sentinel at invalid columns) -> two compares + one select.
        rr = emap_ref[...] + (r * TH - 1)
        h = jnp.where((rr >= 0) & (rr < H), h, 0.0).astype(cdt)

        # conv2 on the (TH, WP) tile: (Cout, 9*Cout) @ (9*Cout, L2).
        acc = jnp.dot(w2_ref[...], taps(h, L2, 0),
                      preferred_element_type=jnp.float32) + b2_ref[...]

        # Residual path (raw x, no PReLU).
        if proj:
            acc = acc + jnp.dot(wp_ref[...], taps(xw, L2, WP + 1),
                                preferred_element_type=jnp.float32) + bp_ref[...]
        else:
            # Identity skip sliced from the resident window (no extra HBM read).
            acc = acc + xw[:, 2 * WP + 2: 2 * WP + 2 + L2].astype(jnp.float32)

        # Lane-dense (Cout, TH*WP) store; the wrapper un-flattens for free.
        o_ref[0] = acc.astype(o_ref.dtype)

    return kernel


def lateral_block_pallas(x_nchw, params, *, row_tile=None):
    """LateralBlock.forward on NCHW input via one gridded Pallas kernel."""
    N, Cin, H, W = (int(d) for d in x_nchw.shape)
    Cout = int(params["w1"].shape[0])
    proj = Cin != Cout
    dt = x_nchw.dtype
    isz = jnp.dtype(dt).itemsize

    # Padded width: >= W+4 (2 halo cols each side) and a multiple of 16 so the
    # 8-row tail block's lane extent (8*WP) is a multiple of 128.
    WP = _round_up(W + 4, 16)

    # Row tile TH (multiple of 8): grow blocks to amortize ~0.35us/step grid
    # overhead, but keep the per-step footprint modest (v7x has 64 MiB VMEM)
    # and keep >= ~4 grid steps so both TensorCores get work.
    if row_tile is None:
        per_row = WP * ((Cin + Cout) * 2 * isz + (9 * Cin + 9 * Cout + 6 * Cout) * 4)
        TH = min(_round_up(H, 8), max(8, (8 << 20) // per_row // 8 * 8))
        while TH > 8 and N * (-(-H // TH)) < 4:
            TH -= 8
    else:
        TH = row_tile
    assert TH % 8 == 0 and TH >= 8
    R = -(-H // TH)                 # number of row tiles
    Hp = R * TH                     # rounded-up row count (extras sliced off)
    Hpad = Hp + 8                   # 2 top halo rows + >= 6 bottom pad/halo rows
    E1, L1, L2 = TH + 3, (TH + 3) * WP, TH * WP

    # Zero-pad (2 halo rows/cols top/left) and flatten (row, col) per channel.
    # Both the pad-then-reshape here and the reshape/slice on the output are
    # free trailing-dim views in HBM.
    x_pad = jnp.pad(x_nchw, ((0, 0), (0, 0), (2, Hpad - H - 2), (2, WP - W - 2)))
    x_flat = x_pad.reshape(N, Cin, Hpad * WP)

    def flat_w(w):  # torch OIHW (Cout, Cin, 3, 3) -> (Cout, 9*Cin), tap-major
        co, ci = int(w.shape[0]), int(w.shape[1])
        # TODO(synk): for large C, cast MXU operands to bf16 here; kept in the
        # model dtype to preserve f32 accuracy at these tiny K.
        return jnp.transpose(w, (0, 2, 3, 1)).reshape(co, 9 * ci).astype(dt)

    alphas = jnp.stack([params["a1"].reshape(()),
                        params["a2"].reshape(())]).astype(jnp.float32)
    w1f = flat_w(params["w1"])
    b1 = params["b1"].reshape(Cout, 1).astype(jnp.float32)
    w2f = flat_w(params["w2"])
    b2 = params["b2"].reshape(Cout, 1).astype(jnp.float32)

    # Grid-invariant per-flat-position extended-row index; large negative
    # sentinel at columns outside the real image.  Row validity (which depends
    # on the tile index) is added in-kernel with two compares.
    col = jnp.arange(WP)
    emap = jnp.where((col >= 1) & (col <= W),
                     jnp.arange(E1)[:, None], -(1 << 20)).astype(jnp.int32)
    emap = emap.reshape(1, L1)

    smem = pltpu.MemorySpace.SMEM
    args = [alphas, emap, x_flat, x_flat, w1f, b1, w2f, b2]
    in_specs = [
        pl.BlockSpec((2,), lambda n, r: (0,), memory_space=smem),          # a1, a2
        pl.BlockSpec((1, L1), lambda n, r: (0, 0)),                        # emap
        pl.BlockSpec((1, Cin, TH * WP), lambda n, r: (n, 0, r)),           # centre rows
        pl.BlockSpec((1, Cin, 8 * WP),
                     lambda n, r: (n, 0, (r + 1) * (TH // 8))),            # 8-row halo
        pl.BlockSpec((Cout, 9 * Cin), lambda n, r: (0, 0)),                # w1
        pl.BlockSpec((Cout, 1), lambda n, r: (0, 0)),                      # b1
        pl.BlockSpec((Cout, 9 * Cout), lambda n, r: (0, 0)),               # w2
        pl.BlockSpec((Cout, 1), lambda n, r: (0, 0)),                      # b2
    ]
    if proj:
        args += [flat_w(params["wp"]),
                 params["bp"].reshape(Cout, 1).astype(jnp.float32)]
        in_specs += [pl.BlockSpec((Cout, 9 * Cin), lambda n, r: (0, 0)),
                     pl.BlockSpec((Cout, 1), lambda n, r: (0, 0))]

    flops = 2 * 9 * N * R * (Cin * Cout * L1 + Cout * Cout * L2
                             + (Cin * Cout * L2 if proj else 0))
    bytes_acc = (N * R * (TH + 8) * WP * Cin * isz           # input window reads
                 + N * Hp * WP * Cout * isz                  # output writes
                 + (w1f.size + w2f.size + (w1f.size if proj else 0)) * isz)

    # Per-step VMEM footprint (double-buffered I/O blocks + patches + f32
    # intermediates + weights) -> derive vmem_limit instead of a blanket value.
    work_bytes = (2 * Cin * (TH + 8) * WP * isz              # input blocks (x2 buf)
                  + 2 * Cout * L2 * isz                      # output blocks (x2 buf)
                  + (9 * Cin * L1 + 9 * Cout * L2
                     + (9 * Cin * L2 if proj else 0)) * isz  # im2col patches
                  + (4 * Cout * L1 + 3 * Cout * L2) * 4      # f32 intermediates
                  + (18 * Cin * Cout + 9 * Cout * Cout) * isz)
    vmem_limit = int(min(max(2 * work_bytes, 8 << 20), 40 << 20))

    out = pl.pallas_call(
        _make_kernel(H, W, TH, WP, Cin, Cout, proj),
        out_shape=jax.ShapeDtypeStruct((N, Cout, Hp * WP), dt),
        grid=(N, R),
        in_specs=in_specs,
        out_specs=pl.BlockSpec((1, Cout, TH * WP), lambda n, r: (n, 0, r)),
        compiler_params=pltpu.CompilerParams(
            dimension_semantics=("parallel", "parallel"),
            vmem_limit_bytes=vmem_limit),
        cost_estimate=pl.CostEstimate(flops=flops, transcendentals=0,
                                      bytes_accessed=bytes_acc),
    )(*args)

    # Un-flatten (free view) and drop padded rows/cols; already NCHW.
    return out.reshape(N, Cout, Hp, WP)[:, :, :H, :W]


# ---------------------------------------------------------------- reference ---
def _conv2d_nchw(x, w, b):
    y = lax.conv_general_dilated(
        x, w, window_strides=(1, 1), padding=((1, 1), (1, 1)),
        dimension_numbers=("NCHW", "OIHW", "NCHW"))
    return y + b.reshape(1, -1, 1, 1)


def _prelu(x, a):
    return jnp.where(x >= 0, x, a * x)


def lateral_block_ref(x, params):
    Cin = x.shape[1]
    Cout = params["w1"].shape[0]
    fx = _prelu(x, params["a1"])
    fx = _conv2d_nchw(fx, params["w1"], params["b1"])
    fx = _prelu(fx, params["a2"])
    fx = _conv2d_nchw(fx, params["w2"], params["b2"])
    skip = _conv2d_nchw(x, params["wp"], params["bp"]) if Cin != Cout else x
    return fx + skip


def _init_params(key, ch_in, ch_out):
    ks = jax.random.split(key, 6)
    params = {
        "a1": jnp.array(0.25, jnp.float32),   # nn.PReLU default init
        "a2": jnp.array(0.25, jnp.float32),
        "w1": 0.1 * jax.random.normal(ks[0], (ch_out, ch_in, 3, 3), jnp.float32),
        "b1": 0.1 * jax.random.normal(ks[1], (ch_out,), jnp.float32),
        "w2": 0.1 * jax.random.normal(ks[2], (ch_out, ch_out, 3, 3), jnp.float32),
        "b2": 0.1 * jax.random.normal(ks[3], (ch_out,), jnp.float32),
    }
    if ch_in != ch_out:
        params["wp"] = 0.1 * jax.random.normal(ks[4], (ch_out, ch_in, 3, 3), jnp.float32)
        params["bp"] = 0.1 * jax.random.normal(ks[5], (ch_out,), jnp.float32)
    return params


if __name__ == "__main__":
    key = jax.random.PRNGKey(0)
    kx, kp1, kp2 = jax.random.split(key, 3)

    N, H, W = 2, 16, 16
    fwd = jax.jit(lateral_block_pallas)

    # Case 1: ch_in != ch_out -> 3x3 projection conv on the residual path.
    ch_in, ch_out = 4, 8
    x = jax.random.normal(kx, (N, ch_in, H, W), jnp.float32)
    params = _init_params(kp1, ch_in, ch_out)
    out = fwd(x, params)
    jax.block_until_ready(out)
    ref = lateral_block_ref(x, params)
    assert out.shape == (N, ch_out, H, W)
    assert jnp.allclose(out, ref, atol=2e-4, rtol=2e-4), "mismatch (projection case)"

    # Case 2: ch_in == ch_out -> identity residual.
    params_eq = _init_params(kp2, ch_in, ch_in)
    out_eq = fwd(x, params_eq)
    jax.block_until_ready(out_eq)
    ref_eq = lateral_block_ref(x, params_eq)
    assert jnp.allclose(out_eq, ref_eq, atol=2e-4, rtol=2e-4), "mismatch (identity case)"

    print("KERNEL_OK")
</pallas_src>

<mosaic_0001>
module attributes {stable_mosaic.version = 11 : i64} {
  func.func @kernel(%arg0: i32, %arg1: i32, %arg2: memref<2xf32, #tpu.memory_space<smem>>, %arg3: memref<1x352xi32, #tpu.memory_space<vmem>>, %arg4: memref<1x4x256xf32, #tpu.memory_space<vmem>>, %arg5: memref<1x4x256xf32, #tpu.memory_space<vmem>>, %arg6: memref<8x36xf32, #tpu.memory_space<vmem>>, %arg7: memref<8x1xf32, #tpu.memory_space<vmem>>, %arg8: memref<8x72xf32, #tpu.memory_space<vmem>>, %arg9: memref<8x1xf32, #tpu.memory_space<vmem>>, %arg10: memref<8x36xf32, #tpu.memory_space<vmem>>, %arg11: memref<8x1xf32, #tpu.memory_space<vmem>>, %arg12: memref<1x8x256xf32, #tpu.memory_space<vmem>>) attributes {dimension_semantics = [#tpu.dimension_semantics<parallel>, #tpu.dimension_semantics<parallel>], iteration_bounds = array<i64: 2, 2>, scalar_prefetch = 0 : i64, scratch_operands = 0 : i64, tpu.core_type = #tpu.core_type<tc>, window_params = [{transform_indices = @transform_0, window_bounds = array<i64: 2>}, {pipeline_mode = #tpu.pipeline_mode<synchronous>, transform_indices = @transform_1, window_bounds = array<i64: 1, 352>}, {transform_indices = @transform_2, window_bounds = array<i64: 1, 4, 256>}, {transform_indices = @transform_3, window_bounds = array<i64: 1, 4, 256>}, {pipeline_mode = #tpu.pipeline_mode<synchronous>, transform_indices = @transform_4, window_bounds = array<i64: 8, 36>}, {pipeline_mode = #tpu.pipeline_mode<synchronous>, transform_indices = @transform_5, window_bounds = array<i64: 8, 1>}, {pipeline_mode = #tpu.pipeline_mode<synchronous>, transform_indices = @transform_6, window_bounds = array<i64: 8, 72>}, {pipeline_mode = #tpu.pipeline_mode<synchronous>, transform_indices = @transform_7, window_bounds = array<i64: 8, 1>}, {pipeline_mode = #tpu.pipeline_mode<synchronous>, transform_indices = @transform_8, window_bounds = array<i64: 8, 36>}, {pipeline_mode = #tpu.pipeline_mode<synchronous>, transform_indices = @transform_9, window_bounds = array<i64: 8, 1>}, {transform_indices = @transform_10, window_bounds = array<i64: 1, 8, 256>}]} {
    %c0 = arith.constant 0 : index
    %c0_0 = arith.constant 0 : index
    %c0_1 = arith.constant 0 : index
    %0 = vector.load %arg4[%c0, %c0_0, %c0_1] : memref<1x4x256xf32, #tpu.memory_space<vmem>>, vector<1x4x256xf32>
    %1 = vector.shape_cast %0 : vector<1x4x256xf32> to vector<4x256xf32>
    %c0_2 = arith.constant 0 : index
    %c0_3 = arith.constant 0 : index
    %c0_4 = arith.constant 0 : index
    %2 = vector.load %arg5[%c0_2, %c0_3, %c0_4] : memref<1x4x256xf32, #tpu.memory_space<vmem>>, vector<1x4x256xf32>
    %3 = vector.shape_cast %2 : vector<1x4x256xf32> to vector<4x256xf32>
    %4 = tpu.concatenate %1, %3 in 1 : vector<4x256xf32>, vector<4x256xf32> -> vector<4x512xf32>
    %c0_5 = arith.constant 0 : index
    %5 = memref.load %arg2[%c0_5] : memref<2xf32, #tpu.memory_space<smem>>
    %c1 = arith.constant 1 : index
    %6 = memref.load %arg2[%c1] : memref<2xf32, #tpu.memory_space<smem>>
    %cst = arith.constant 0.000000e+00 : f32
    %7 = vector.broadcast %cst : f32 to vector<4x512xf32>
    %8 = arith.cmpf oge, %4, %7 : vector<4x512xf32>
    %9 = vector.broadcast %5 : f32 to vector<4x512xf32>
    %10 = arith.mulf %9, %4 : vector<4x512xf32>
    %11 = arith.select %8, %4, %10 : vector<4x512xi1>, vector<4x512xf32>
    %c0_6 = arith.constant 0 : index
    %c0_7 = arith.constant 0 : index
    %12 = vector.load %arg6[%c0_6, %c0_7] : memref<8x36xf32, #tpu.memory_space<vmem>>, vector<8x36xf32>
    %13 = vector.extract_strided_slice %11 {offsets = [0, 0], sizes = [4, 352], strides = [1, 1]} : vector<4x512xf32> to vector<4x352xf32>
    %14 = vector.extract_strided_slice %11 {offsets = [0, 1], sizes = [4, 352], strides = [1, 1]} : vector<4x512xf32> to vector<4x352xf32>
    %15 = vector.extract_strided_slice %11 {offsets = [0, 2], sizes = [4, 352], strides = [1, 1]} : vector<4x512xf32> to vector<4x352xf32>
    %16 = vector.extract_strided_slice %11 {offsets = [0, 32], sizes = [4, 352], strides = [1, 1]} : vector<4x512xf32> to vector<4x352xf32>
    %17 = vector.extract_strided_slice %11 {offsets = [0, 33], sizes = [4, 352], strides = [1, 1]} : vector<4x512xf32> to vector<4x352xf32>
    %18 = vector.extract_strided_slice %11 {offsets = [0, 34], sizes = [4, 352], strides = [1, 1]} : vector<4x512xf32> to vector<4x352xf32>
    %19 = vector.extract_strided_slice %11 {offsets = [0, 64], sizes = [4, 352], strides = [1, 1]} : vector<4x512xf32> to vector<4x352xf32>
    %20 = vector.extract_strided_slice %11 {offsets = [0, 65], sizes = [4, 352], strides = [1, 1]} : vector<4x512xf32> to vector<4x352xf32>
    %21 = vector.extract_strided_slice %11 {offsets = [0, 66], sizes = [4, 352], strides = [1, 1]} : vector<4x512xf32> to vector<4x352xf32>
    %22 = tpu.concatenate %13, %14, %15, %16, %17, %18, %19, %20, %21 in 0 : vector<4x352xf32>, vector<4x352xf32>, vector<4x352xf32>, vector<4x352xf32>, vector<4x352xf32>, vector<4x352xf32>, vector<4x352xf32>, vector<4x352xf32>, vector<4x352xf32> -> vector<36x352xf32>
    %cst_8 = arith.constant dense<0.000000e+00> : vector<8x352xf32>
    %23 = tpu.matmul %12, %22, %cst_8 {dimension_numbers = #tpu.dot_dimension_numbers<[1], [0], [0], [1], [0, 0, 1, 1], [], []>} : vector<8x36xf32>, vector<36x352xf32>, vector<8x352xf32> -> vector<8x352xf32>
    %c0_9 = arith.constant 0 : index
    %c0_10 = arith.constant 0 : index
    %24 = vector.load %arg7[%c0_9, %c0_10] : memref<8x1xf32, #tpu.memory_space<vmem>>, vector<8x1xf32>
    %25 = vector.broadcast %24 : vector<8x1xf32> to vector<8x352xf32>
    %26 = arith.addf %23, %25 : vector<8x352xf32>
    %cst_11 = arith.constant 0.000000e+00 : f32
    %27 = vector.broadcast %cst_11 : f32 to vector<8x352xf32>
    %28 = arith.cmpf oge, %26, %27 : vector<8x352xf32>
    %29 = vector.broadcast %6 : f32 to vector<8x352xf32>
    %30 = arith.mulf %29, %26 : vector<8x352xf32>
    %31 = arith.select %28, %26, %30 : vector<8x352xi1>, vector<8x352xf32>
    %c0_12 = arith.constant 0 : index
    %c0_13 = arith.constant 0 : index
    %32 = vector.load %arg3[%c0_12, %c0_13] : memref<1x352xi32, #tpu.memory_space<vmem>>, vector<1x352xi32>
    %c8_i32 = arith.constant 8 : i32
    %33 = arith.muli %arg1, %c8_i32 : i32
    %c1_i32 = arith.constant 1 : i32
    %34 = arith.subi %33, %c1_i32 : i32
    %35 = vector.broadcast %34 : i32 to vector<1x352xi32>
    %36 = arith.addi %32, %35 : vector<1x352xi32>
    %c0_i32 = arith.constant 0 : i32
    %37 = vector.broadcast %c0_i32 : i32 to vector<1x352xi32>
    %38 = arith.cmpi sge, %36, %37 : vector<1x352xi32>
    %c16_i32 = arith.constant 16 : i32
    %39 = vector.broadcast %c16_i32 : i32 to vector<1x352xi32>
    %40 = arith.cmpi slt, %36, %39 : vector<1x352xi32>
    %41 = arith.andi %38, %40 : vector<1x352xi1>
    %cst_14 = arith.constant 0.000000e+00 : f32
    %42 = vector.shape_cast %41 : vector<1x352xi1> to vector<1x352xi1>
    %43 = vector.broadcast %42 : vector<1x352xi1> to vector<8x352xi1>
    %44 = vector.broadcast %cst_14 : f32 to vector<8x352xf32>
    %45 = arith.select %43, %31, %44 : vector<8x352xi1>, vector<8x352xf32>
    %c0_15 = arith.constant 0 : index
    %c0_16 = arith.constant 0 : index
    %46 = vector.load %arg8[%c0_15, %c0_16] : memref<8x72xf32, #tpu.memory_space<vmem>>, vector<8x72xf32>
    %47 = vector.extract_strided_slice %45 {offsets = [0, 0], sizes = [8, 256], strides = [1, 1]} : vector<8x352xf32> to vector<8x256xf32>
    %48 = vector.extract_strided_slice %45 {offsets = [0, 1], sizes = [8, 256], strides = [1, 1]} : vector<8x352xf32> to vector<8x256xf32>
    %49 = vector.extract_strided_slice %45 {offsets = [0, 2], sizes = [8, 256], strides = [1, 1]} : vector<8x352xf32> to vector<8x256xf32>
    %50 = vector.extract_strided_slice %45 {offsets = [0, 32], sizes = [8, 256], strides = [1, 1]} : vector<8x352xf32> to vector<8x256xf32>
    %51 = vector.extract_strided_slice %45 {offsets = [0, 33], sizes = [8, 256], strides = [1, 1]} : vector<8x352xf32> to vector<8x256xf32>
    %52 = vector.extract_strided_slice %45 {offsets = [0, 34], sizes = [8, 256], strides = [1, 1]} : vector<8x352xf32> to vector<8x256xf32>
    %53 = vector.extract_strided_slice %45 {offsets = [0, 64], sizes = [8, 256], strides = [1, 1]} : vector<8x352xf32> to vector<8x256xf32>
    %54 = vector.extract_strided_slice %45 {offsets = [0, 65], sizes = [8, 256], strides = [1, 1]} : vector<8x352xf32> to vector<8x256xf32>
    %55 = vector.extract_strided_slice %45 {offsets = [0, 66], sizes = [8, 256], strides = [1, 1]} : vector<8x352xf32> to vector<8x256xf32>
    %56 = tpu.concatenate %47, %48, %49, %50, %51, %52, %53, %54, %55 in 0 : vector<8x256xf32>, vector<8x256xf32>, vector<8x256xf32>, vector<8x256xf32>, vector<8x256xf32>, vector<8x256xf32>, vector<8x256xf32>, vector<8x256xf32>, vector<8x256xf32> -> vector<72x256xf32>
    %cst_17 = arith.constant dense<0.000000e+00> : vector<8x256xf32>
    %57 = tpu.matmul %46, %56, %cst_17 {dimension_numbers = #tpu.dot_dimension_numbers<[1], [0], [0], [1], [0, 0, 1, 1], [], []>} : vector<8x72xf32>, vector<72x256xf32>, vector<8x256xf32> -> vector<8x256xf32>
    %c0_18 = arith.constant 0 : index
    %c0_19 = arith.constant 0 : index
    %58 = vector.load %arg9[%c0_18, %c0_19] : memref<8x1xf32, #tpu.memory_space<vmem>>, vector<8x1xf32>
    %59 = vector.broadcast %58 : vector<8x1xf32> to vector<8x256xf32>
    %60 = arith.addf %57, %59 : vector<8x256xf32>
    %c0_20 = arith.constant 0 : index
    %c0_21 = arith.constant 0 : index
    %61 = vector.load %arg10[%c0_20, %c0_21] : memref<8x36xf32, #tpu.memory_space<vmem>>, vector<8x36xf32>
    %62 = vector.extract_strided_slice %4 {offsets = [0, 33], sizes = [4, 256], strides = [1, 1]} : vector<4x512xf32> to vector<4x256xf32>
    %63 = vector.extract_strided_slice %4 {offsets = [0, 34], sizes = [4, 256], strides = [1, 1]} : vector<4x512xf32> to vector<4x256xf32>
    %64 = vector.extract_strided_slice %4 {offsets = [0, 35], sizes = [4, 256], strides = [1, 1]} : vector<4x512xf32> to vector<4x256xf32>
    %65 = vector.extract_strided_slice %4 {offsets = [0, 65], sizes = [4, 256], strides = [1, 1]} : vector<4x512xf32> to vector<4x256xf32>
    %66 = vector.extract_strided_slice %4 {offsets = [0, 66], sizes = [4, 256], strides = [1, 1]} : vector<4x512xf32> to vector<4x256xf32>
    %67 = vector.extract_strided_slice %4 {offsets = [0, 67], sizes = [4, 256], strides = [1, 1]} : vector<4x512xf32> to vector<4x256xf32>
    %68 = vector.extract_strided_slice %4 {offsets = [0, 97], sizes = [4, 256], strides = [1, 1]} : vector<4x512xf32> to vector<4x256xf32>
    %69 = vector.extract_strided_slice %4 {offsets = [0, 98], sizes = [4, 256], strides = [1, 1]} : vector<4x512xf32> to vector<4x256xf32>
    %70 = vector.extract_strided_slice %4 {offsets = [0, 99], sizes = [4, 256], strides = [1, 1]} : vector<4x512xf32> to vector<4x256xf32>
    %71 = tpu.concatenate %62, %63, %64, %65, %66, %67, %68, %69, %70 in 0 : vector<4x256xf32>, vector<4x256xf32>, vector<4x256xf32>, vector<4x256xf32>, vector<4x256xf32>, vector<4x256xf32>, vector<4x256xf32>, vector<4x256xf32>, vector<4x256xf32> -> vector<36x256xf32>
    %cst_22 = arith.constant dense<0.000000e+00> : vector<8x256xf32>
    %72 = tpu.matmul %61, %71, %cst_22 {dimension_numbers = #tpu.dot_dimension_numbers<[1], [0], [0], [1], [0, 0, 1, 1], [], []>} : vector<8x36xf32>, vector<36x256xf32>, vector<8x256xf32> -> vector<8x256xf32>
    %73 = arith.addf %60, %72 : vector<8x256xf32>
    %c0_23 = arith.constant 0 : index
    %c0_24 = arith.constant 0 : index
    %74 = vector.load %arg11[%c0_23, %c0_24] : memref<8x1xf32, #tpu.memory_space<vmem>>, vector<8x1xf32>
    %75 = vector.broadcast %74 : vector<8x1xf32> to vector<8x256xf32>
    %76 = arith.addf %73, %75 : vector<8x256xf32>
    %c0_25 = arith.constant 0 : index
    %c0_26 = arith.constant 0 : index
    %c0_27 = arith.constant 0 : index
    %77 = vector.load %arg12[%c0_25, %c0_26, %c0_27] : memref<1x8x256xf32, #tpu.memory_space<vmem>>, vector<1x8x256xf32>
    %78 = vector.shape_cast %77 : vector<1x8x256xf32> to vector<8x256xf32>
    %79 = vector.shape_cast %76 : vector<8x256xf32> to vector<1x8x256xf32>
    tpu.vector_store %arg12[%c0_25, %c0_26, %c0_27], %79 {strides = array<i32>} : memref<1x8x256xf32, #tpu.memory_space<vmem>>, vector<1x8x256xf32>,
    return
  }
  func.func @transform_0(%arg0: i32, %arg1: i32) -> i32 {
    %c0_i32 = arith.constant 0 : i32
    %c0_i32_0 = arith.constant 0 : i32
    return %c0_i32 : i32
  }
  func.func @transform_1(%arg0: i32, %arg1: i32) -> (i32, i32) {
    %c0_i32 = arith.constant 0 : i32
    %c0_i32_0 = arith.constant 0 : i32
    %c0_i32_1 = arith.constant 0 : i32
    return %c0_i32, %c0_i32_0 : i32, i32
  }
  func.func @transform_2(%arg0: i32, %arg1: i32) -> (i32, i32, i32) {
    %c0_i32 = arith.constant 0 : i32
    %c0_i32_0 = arith.constant 0 : i32
    return %arg0, %c0_i32, %arg1 : i32, i32, i32
  }
  func.func @transform_3(%arg0: i32, %arg1: i32) -> (i32, i32, i32) {
    %c1_i32 = arith.constant 1 : i32
    %0 = arith.addi %arg1, %c1_i32 : i32
    %c1_i32_0 = arith.constant 1 : i32
    %1 = arith.muli %0, %c1_i32_0 : i32
    %c0_i32 = arith.constant 0 : i32
    %c0_i32_1 = arith.constant 0 : i32
    return %arg0, %c0_i32, %1 : i32, i32, i32
  }
  func.func @transform_4(%arg0: i32, %arg1: i32) -> (i32, i32) {
    %c0_i32 = arith.constant 0 : i32
    %c0_i32_0 = arith.constant 0 : i32
    %c0_i32_1 = arith.constant 0 : i32
    return %c0_i32, %c0_i32_0 : i32, i32
  }
  func.func @transform_5(%arg0: i32, %arg1: i32) -> (i32, i32) {
    %c0_i32 = arith.constant 0 : i32
    %c0_i32_0 = arith.constant 0 : i32
    %c0_i32_1 = arith.constant 0 : i32
    return %c0_i32, %c0_i32_0 : i32, i32
  }
  func.func @transform_6(%arg0: i32, %arg1: i32) -> (i32, i32) {
    %c0_i32 = arith.constant 0 : i32
    %c0_i32_0 = arith.constant 0 : i32
    %c0_i32_1 = arith.constant 0 : i32
    return %c0_i32, %c0_i32_0 : i32, i32
  }
  func.func @transform_7(%arg0: i32, %arg1: i32) -> (i32, i32) {
    %c0_i32 = arith.constant 0 : i32
    %c0_i32_0 = arith.constant 0 : i32
    %c0_i32_1 = arith.constant 0 : i32
    return %c0_i32, %c0_i32_0 : i32, i32
  }
  func.func @transform_8(%arg0: i32, %arg1: i32) -> (i32, i32) {
    %c0_i32 = arith.constant 0 : i32
    %c0_i32_0 = arith.constant 0 : i32
    %c0_i32_1 = arith.constant 0 : i32
    return %c0_i32, %c0_i32_0 : i32, i32
  }
  func.func @transform_9(%arg0: i32, %arg1: i32) -> (i32, i32) {
    %c0_i32 = arith.constant 0 : i32
    %c0_i32_0 = arith.constant 0 : i32
    %c0_i32_1 = arith.constant 0 : i32
    return %c0_i32, %c0_i32_0 : i32, i32
  }
  func.func @transform_10(%arg0: i32, %arg1: i32) -> (i32, i32, i32) {
    %c0_i32 = arith.constant 0 : i32
    %c0_i32_0 = arith.constant 0 : i32
    return %arg0, %c0_i32, %arg1 : i32, i32, i32
  }
}

</mosaic_0001>

<llo_original>
// kernel: lateral_block_pallas.1
$region0: #{lateral_block_pallas.1}
  #allocation0 [shape = 'u32[]', space=smem, size = 0x4, offset = 0x4, fixed_abs, tag = 'smem constant byte address 0x4 - core index']
  #allocation1 [shape = 'u32[72,128]{1,0:T(1,128)}', space=vmem, size = 0x9000, scoped, tag = 'internal scratch']
  %s0 = inlined_call_operand.vmem [shape: f32[2], index: 0, kind: input, shape index: {}]
  %s1 = inlined_call_operand.vmem [shape: s32[1,352], index: 1, kind: input, shape index: {}]
  %s2 = inlined_call_operand.vmem [shape: f32[2,4,768], index: 2, kind: input, shape index: {}, may-alias: {2,3}]
  %s3 = inlined_call_operand.vmem [shape: f32[2,4,768], index: 3, kind: input, shape index: {}, may-alias: {2,3}]
  %s4 = inlined_call_operand.vmem [shape: f32[8,36], index: 4, kind: input, shape index: {}]
  %s5 = inlined_call_operand.vmem [shape: f32[8,1], index: 5, kind: input, shape index: {}]
  %s6 = inlined_call_operand.vmem [shape: f32[8,72], index: 6, kind: input, shape index: {}]
  %s7 = inlined_call_operand.vmem [shape: f32[8,1], index: 7, kind: input, shape index: {}]
  %s8 = inlined_call_operand.vmem [shape: f32[8,36], index: 8, kind: input, shape index: {}]
  %s9 = inlined_call_operand.vmem [shape: f32[8,1], index: 9, kind: input, shape index: {}]
  %s10 = inlined_call_operand.vmem [shape: f32[2,8,512], index: 10, kind: output, shape index: {}]
  %s11 = sld [smem:[#allocation0]]
  $region77: #{lateral_block_pallas.1} parent=0
    _
  %s13 = ssub.s32 1, %s11
  %s14 = scalar_select 0, %s13, %s11
  $region1: #{lateral_block_pallas.1} parent=0
    #allocation2 [shape = 'u8[512]{0}', space=smem, size = 0x200, scoped, tag = 'input window, operand 0, single buffered']
    #allocation3 [shape = 's32[2]{0}', space=sflag, size = 0x8, scoped, tag = 'scoped memory for lateral_block_pallas.1']
    %15 = vsyncpa [#allocation3], 0
    loop: start=0, step=1, limit=6
    $region2: #{lateral_block_pallas.1} parent=1 // loop_pre_header
      _
    $region3: #{lateral_block_pallas.1} parent=1 // loop_header
      %s17 = sphi 0, %s21
      %p18 = scmp.ge.s32.totalorder %s17, 6
      %s24 = sphi 0, %s36
      %s25 = sphi 0, %s32
      %s26 = sphi 0, %s24
      %s27 = sphi 0, %s25
      %s28 = sphi 0, %s26
      %s29 = sphi 0, %s27
      %s37 = sphi 0, %s37
      %s39 = sphi 0, %s37
      %s40 = sphi 0, %s39
      %s54 = sphi 0, %s40
      %s58 = sphi 0, %s58
      %s60 = sphi 0, %s58
      %s61 = sphi 0, %s60
      %s75 = sphi 0, %s61
      %s83 = sphi 0, %s85
      %s86 = sphi 0, %s83
      %s87 = sphi 0, %s86
      %s103 = sphi 0, %s87
      %s113 = sphi 0, %s115
      %s116 = sphi 0, %s113
      %s117 = sphi 0, %s116
      %s133 = sphi 0, %s117
      %s137 = sphi 0, %s137
      %s139 = sphi 0, %s137
      %s140 = sphi 0, %s139
      %s154 = sphi 0, %s140
      %s158 = sphi 0, %s158
      %s160 = sphi 0, %s158
      %s161 = sphi 0, %s160
      %s175 = sphi 0, %s161
      %s179 = sphi 0, %s179
      %s181 = sphi 0, %s179
      %s182 = sphi 0, %s181
      %s196 = sphi 0, %s182
      %s200 = sphi 0, %s200
      %s202 = sphi 0, %s200
      %s203 = sphi 0, %s202
      %s217 = sphi 0, %s203
      %s221 = sphi 0, %s221
      %s223 = sphi 0, %s221
      %s224 = sphi 0, %s223
      %s238 = sphi 0, %s224
      %s242 = sphi 0, %s242
      %s244 = sphi 0, %s242
      %s245 = sphi 0, %s244
      %s259 = sphi 0, %s245
      %s267 = sphi 0, %s269
      %s270 = sphi 0, %s267
      %s271 = sphi 0, %s270
      %s287 = sphi 0, %s271
    $region4: #{lateral_block_pallas.1} parent=1 // loop_header_branch
      %20 = sbr.rel (%p18) target = $region8
    $region5: #{lateral_block_pallas.1} parent=1 // loop_body
      %s22 = ssub.s32 %s17, 1
      %s23 = ssub.s32 %s17, 2
      %s30 = sadd.s32 1, %s25
      %p31 = scmp.ge.s32.totalorder %s30, 2
      %s32 = scalar_select %p31, 0, %s30
      %s33 = sadd.s32 1, %s24
      %s34 = scalar_select %p31, %s33, %s24
      %p35 = scmp.ge.s32.totalorder %s34, 2
      %s36 = scalar_select %p35, 0, %s34
      %s38 = sadd.s32 %s37, 1
      %p41 = scmp.eq.s32.totalorder %s17, 3
      %p42 = scmp.ne.s32.totalorder %s37, %s39
      %p43 = scmp.eq.s32.totalorder %s17, 0
      %p44 = por %p42, %p43
      %p45 = scmp.ne.s32.totalorder %s37, %s39
      %p46 = scmp.eq.s32.totalorder %s22, 3
      %p47 = por %p45, %p46
      %p48 = scmp.ne.s32.totalorder %s39, %s40
      %p49 = scmp.eq.s32.totalorder %s22, 0
      %p50 = por %p48, %p49
      %p51 = scmp.ne.s32.totalorder %s39, %s40
      %p52 = scmp.eq.s32.totalorder %s23, 3
      %p53 = por %p51, %p52
      %p55 = scmp.ne.s32.totalorder %s40, %s54
      %p56 = scmp.eq.s32.totalorder %s23, 0
      %p57 = por %p55, %p56
      %s59 = sadd.s32 %s58, 1
      %p62 = scmp.eq.s32.totalorder %s17, 3
      %p63 = scmp.ne.s32.totalorder %s58, %s60
      %p64 = scmp.eq.s32.totalorder %s17, 0
      %p65 = por %p63, %p64
      %p66 = scmp.ne.s32.totalorder %s58, %s60
      %p67 = scmp.eq.s32.totalorder %s22, 3
      %p68 = por %p66, %p67
      %p69 = scmp.ne.s32.totalorder %s60, %s61
      %p70 = scmp.eq.s32.totalorder %s22, 0
      %p71 = por %p69, %p70
      %p72 = scmp.ne.s32.totalorder %s60, %s61
      %p73 = scmp.eq.s32.totalorder %s23, 3
      %p74 = por %p72, %p73
      %p76 = scmp.ne.s32.totalorder %s61, %s75
      %p77 = scmp.eq.s32.totalorder %s23, 0
      %p78 = por %p76, %p77
      %s79 = ssub.s32 %s24, %s36
      %s80 = ssub.s32 %s25, %s32
      %s81 = sor.u32 %s79, %s80
      %p82 = scmp.eq.s32.totalorder %s81, 0
      %s84 = sadd.s32 %s83, 1
      %s85 = scalar_select %p82, %s83, %s84
      %p88 = pneg %p82
      %p89 = scmp.eq.s32.totalorder %s17, 3
      %p90 = por %p88, %p89
      %p91 = scmp.ne.s32.totalorder %s83, %s86
      %p92 = scmp.eq.s32.totalorder %s17, 0
      %p93 = por %p91, %p92
      %p94 = scmp.ne.s32.totalorder %s83, %s86
      %p95 = scmp.eq.s32.totalorder %s22, 3
      %p96 = por %p94, %p95
      %p97 = scmp.ne.s32.totalorder %s86, %s87
      %p98 = scmp.eq.s32.totalorder %s22, 0
      %p99 = por %p97, %p98
      %p100 = scmp.ne.s32.totalorder %s86, %s87
      %p101 = scmp.eq.s32.totalorder %s23, 3
      %p102 = por %p100, %p101
      %p104 = scmp.ne.s32.totalorder %s87, %s103
      %p105 = scmp.eq.s32.totalorder %s23, 0
      %p106 = por %p104, %p105
      %s107 = sadd.s32 %s25, 1
      %s108 = sadd.s32 %s32, 1
      %s109 = ssub.s32 %s24, %s36
      %s110 = ssub.s32 %s107, %s108
      %s111 = sor.u32 %s109, %s110
      %p112 = scmp.eq.s32.totalorder %s111, 0
      %s114 = sadd.s32 %s113, 1
      %s115 = scalar_select %p112, %s113, %s114
      %p118 = pneg %p112
      %p119 = scmp.eq.s32.totalorder %s17, 3
      %p120 = por %p118, %p119
      %p121 = scmp.ne.s32.totalorder %s113, %s116
      %p122 = scmp.eq.s32.totalorder %s17, 0
      %p123 = por %p121, %p122
      %p124 = scmp.ne.s32.totalorder %s113, %s116
      %p125 = scmp.eq.s32.totalorder %s22, 3
      %p126 = por %p124, %p125
      %p127 = scmp.ne.s32.totalorder %s116, %s117
      %p128 = scmp.eq.s32.totalorder %s22, 0
      %p129 = por %p127, %p128
      %p130 = scmp.ne.s32.totalorder %s116, %s117
      %p131 = scmp.eq.s32.totalorder %s23, 3
      %p132 = por %p130, %p131
      %p134 = scmp.ne.s32.totalorder %s117, %s133
      %p135 = scmp.eq.s32.totalorder %s23, 0
      %p136 = por %p134, %p135
      %s138 = sadd.s32 %s137, 1
      %p141 = scmp.eq.s32.totalorder %s17, 3
      %p142 = scmp.ne.s32.totalorder %s137, %s139
      %p143 = scmp.eq.s32.totalorder %s17, 0
      %p144 = por %p142, %p143
      %p145 = scmp.ne.s32.totalorder %s137, %s139
      %p146 = scmp.eq.s32.totalorder %s22, 3
      %p147 = por %p145, %p146
      %p148 = scmp.ne.s32.totalorder %s139, %s140
      %p149 = scmp.eq.s32.totalorder %s22, 0
      %p150 = por %p148, %p149
      %p151 = scmp.ne.s32.totalorder %s139, %s140
      %p152 = scmp.eq.s32.totalorder %s23, 3
      %p153 = por %p151, %p152
      %p155 = scmp.ne.s32.totalorder %s140, %s154
      %p156 = scmp.eq.s32.totalorder %s23, 0
      %p157 = por %p155, %p156
      %s159 = sadd.s32 %s158, 1
      %p162 = scmp.eq.s32.totalorder %s17, 3
      %p163 = scmp.ne.s32.totalorder %s158, %s160
      %p164 = scmp.eq.s32.totalorder %s17, 0
      %p165 = por %p163, %p164
      %p166 = scmp.ne.s32.totalorder %s158, %s160
      %p167 = scmp.eq.s32.totalorder %s22, 3
      %p168 = por %p166, %p167
      %p169 = scmp.ne.s32.totalorder %s160, %s161
      %p170 = scmp.eq.s32.totalorder %s22, 0
      %p171 = por %p169, %p170
      %p172 = scmp.ne.s32.totalorder %s160, %s161
      %p173 = scmp.eq.s32.totalorder %s23, 3
      %p174 = por %p172, %p173
      %p176 = scmp.ne.s32.totalorder %s161, %s175
      %p177 = scmp.eq.s32.totalorder %s23, 0
      %p178 = por %p176, %p177
      %s180 = sadd.s32 %s179, 1
      %p183 = scmp.eq.s32.totalorder %s17, 3
      %p184 = scmp.ne.s32.totalorder %s179, %s181
      %p185 = scmp.eq.s32.totalorder %s17, 0
      %p186 = por %p184, %p185
      %p187 = scmp.ne.s32.totalorder %s179, %s181
      %p188 = scmp.eq.s32.totalorder %s22, 3
      %p189 = por %p187, %p188
      %p190 = scmp.ne.s32.totalorder %s181, %s182
      %p191 = scmp.eq.s32.totalorder %s22, 0
      %p192 = por %p190, %p191
      %p193 = scmp.ne.s32.totalorder %s181, %s182
      %p194 = scmp.eq.s32.totalorder %s23, 3
      %p195 = por %p193, %p194
      %p197 = scmp.ne.s32.totalorder %s182, %s196
      %p198 = scmp.eq.s32.totalorder %s23, 0
      %p199 = por %p197, %p198
      %s201 = sadd.s32 %s200, 1
      %p204 = scmp.eq.s32.totalorder %s17, 3
      %p205 = scmp.ne.s32.totalorder %s200, %s202
      %p206 = scmp.eq.s32.totalorder %s17, 0
      %p207 = por %p205, %p206
      %p208 = scmp.ne.s32.totalorder %s200, %s202
      %p209 = scmp.eq.s32.totalorder %s22, 3
      %p210 = por %p208, %p209
      %p211 = scmp.ne.s32.totalorder %s202, %s203
      %p212 = scmp.eq.s32.totalorder %s22, 0
      %p213 = por %p211, %p212
      %p214 = scmp.ne.s32.totalorder %s202, %s203
      %p215 = scmp.eq.s32.totalorder %s23, 3
      %p216 = por %p214, %p215
      %p218 = scmp.ne.s32.totalorder %s203, %s217
      %p219 = scmp.eq.s32.totalorder %s23, 0
      %p220 = por %p218, %p219
      %s222 = sadd.s32 %s221, 1
      %p225 = scmp.eq.s32.totalorder %s17, 3
      %p226 = scmp.ne.s32.totalorder %s221, %s223
      %p227 = scmp.eq.s32.totalorder %s17, 0
      %p228 = por %p226, %p227
      %p229 = scmp.ne.s32.totalorder %s221, %s223
      %p230 = scmp.eq.s32.totalorder %s22, 3
      %p231 = por %p229, %p230
      %p232 = scmp.ne.s32.totalorder %s223, %s224
      %p233 = scmp.eq.s32.totalorder %s22, 0
      %p234 = por %p232, %p233
      %p235 = scmp.ne.s32.totalorder %s223, %s224
      %p236 = scmp.eq.s32.totalorder %s23, 3
      %p237 = por %p235, %p236
      %p239 = scmp.ne.s32.totalorder %s224, %s238
      %p240 = scmp.eq.s32.totalorder %s23, 0
      %p241 = por %p239, %p240
      %s243 = sadd.s32 %s242, 1
      %p246 = scmp.eq.s32.totalorder %s17, 3
      %p247 = scmp.ne.s32.totalorder %s242, %s244
      %p248 = scmp.eq.s32.totalorder %s17, 0
      %p249 = por %p247, %p248
      %p250 = scmp.ne.s32.totalorder %s242, %s244
      %p251 = scmp.eq.s32.totalorder %s22, 3
      %p252 = por %p250, %p251
      %p253 = scmp.ne.s32.totalorder %s244, %s245
      %p254 = scmp.eq.s32.totalorder %s22, 0
      %p255 = por %p253, %p254
      %p256 = scmp.ne.s32.totalorder %s244, %s245
      %p257 = scmp.eq.s32.totalorder %s23, 3
      %p258 = por %p256, %p257
      %p260 = scmp.ne.s32.totalorder %s245, %s259
      %p261 = scmp.eq.s32.totalorder %s23, 0
      %p262 = por %p260, %p261
      %s263 = ssub.s32 %s24, %s36
      %s264 = ssub.s32 %s25, %s32
      %s265 = sor.u32 %s263, %s264
      %p266 = scmp.eq.s32.totalorder %s265, 0
      %s268 = sadd.s32 %s267, 1
      %s269 = scalar_select %p266, %s267, %s268
      %p272 = pneg %p266
      %p273 = scmp.eq.s32.totalorder %s17, 3
      %p274 = por %p272, %p273
      %p275 = scmp.ne.s32.totalorder %s267, %s270
      %p276 = scmp.eq.s32.totalorder %s17, 0
      %p277 = por %p275, %p276
      %p278 = scmp.ne.s32.totalorder %s267, %s270
      %p279 = scmp.eq.s32.totalorder %s22, 3
      %p280 = por %p278, %p279
      %p281 = scmp.ne.s32.totalorder %s270, %s271
      %p282 = scmp.eq.s32.totalorder %s22, 0
      %p283 = por %p281, %p282
      %p284 = scmp.ne.s32.totalorder %s270, %s271
      %p285 = scmp.eq.s32.totalorder %s23, 3
      %p286 = por %p284, %p285
      %p288 = scmp.ne.s32.totalorder %s271, %s287
      %p289 = scmp.eq.s32.totalorder %s23, 0
      %p290 = por %p288, %p289
      %p291 = scmp.le.s32.totalorder 1, %s17
      %p292 = scmp.lt.s32.totalorder %s17, 5
      %p293 = pnand %p291, %p292
      %p294 = pneg %p293
      // Predicated region
      $region9: #{lateral_block_pallas.1} parent=5 // pred_check
        _
      $region10: #{lateral_block_pallas.1} parent=5 // pred_check_branch
        %296 = sbr.rel (%p293) target = $region12
      $region11: #{lateral_block_pallas.1} parent=5 // pred_region
        %s297 = ssub.s32 %s17, 1
        // Predicated region
        $region13: #{lateral_block_pallas.1} parent=11 // pred_check
          %p298 = pneg %p50
        $region14: #{lateral_block_pallas.1} parent=11 // pred_check_branch
          %300 = sbr.rel (%p298) target = $region16
        $region15: #{lateral_block_pallas.1} parent=11 // pred_region
          %302 = vsyncadd [#allocation3], 0
          %s304 = sshll.u32 %s0, 4
          %s305 = int_to_ptr.vmem [resolvable:$true] %s304
          %307 = dma.vmem_to_smem %s305, 16, [#allocation2], [#allocation3]
        $region16: #{lateral_block_pallas.1} parent=11 // pred_fallthru
          _
        // Predicated region
        $region17: #{lateral_block_pallas.1} parent=11 // pred_check
          %p308 = pneg %p71
        $region18: #{lateral_block_pallas.1} parent=11 // pred_check_branch
          %310 = sbr.rel (%p308) target = $region20
        $region19: #{lateral_block_pallas.1} parent=11 // pred_region
          _
        $region20: #{lateral_block_pallas.1} parent=11 // pred_fallthru
          _
        // Predicated region
        $region21: #{lateral_block_pallas.1} parent=11 // pred_check
          %p311 = pneg %p150
        $region22: #{lateral_block_pallas.1} parent=11 // pred_check_branch
          %313 = sbr.rel (%p311) target = $region24
        $region23: #{lateral_block_pallas.1} parent=11 // pred_region
          _
        $region24: #{lateral_block_pallas.1} parent=11 // pred_fallthru
          _
        // Predicated region
        $region25: #{lateral_block_pallas.1} parent=11 // pred_check
          %p314 = pneg %p171
        $region26: #{lateral_block_pallas.1} parent=11 // pred_check_branch
          %316 = sbr.rel (%p314) target = $region28
        $region27: #{lateral_block_pallas.1} parent=11 // pred_region
          _
        $region28: #{lateral_block_pallas.1} parent=11 // pred_fallthru
          _
        // Predicated region
        $region29: #{lateral_block_pallas.1} parent=11 // pred_check
          %p317 = pneg %p192
        $region30: #{lateral_block_pallas.1} parent=11 // pred_check_branch
          %319 = sbr.rel (%p317) target = $region32
        $region31: #{lateral_block_pallas.1} parent=11 // pred_region
          _
        $region32: #{lateral_block_pallas.1} parent=11 // pred_fallthru
          _
        // Predicated region
        $region33: #{lateral_block_pallas.1} parent=11 // pred_check
          %p320 = pneg %p213
        $region34: #{lateral_block_pallas.1} parent=11 // pred_check_branch
          %322 = sbr.rel (%p320) target = $region36
        $region35: #{lateral_block_pallas.1} parent=11 // pred_region
          _
        $region36: #{lateral_block_pallas.1} parent=11 // pred_fallthru
          _
        // Predicated region
        $region37: #{lateral_block_pallas.1} parent=11 // pred_check
          %p323 = pneg %p234
        $region38: #{lateral_block_pallas.1} parent=11 // pred_check_branch
          %325 = sbr.rel (%p323) target = $region40
        $region39: #{lateral_block_pallas.1} parent=11 // pred_region
          _
        $region40: #{lateral_block_pallas.1} parent=11 // pred_fallthru
          _
        // Predicated region
        $region41: #{lateral_block_pallas.1} parent=11 // pred_check
          %p326 = pneg %p255
        $region42: #{lateral_block_pallas.1} parent=11 // pred_check_branch
          %328 = sbr.rel (%p326) target = $region44
        $region43: #{lateral_block_pallas.1} parent=11 // pred_region
          _
        $region44: #{lateral_block_pallas.1} parent=11 // pred_fallthru
          _
      $region12: #{lateral_block_pallas.1} parent=5 // pred_fallthru
        _
      %p329 = scmp.lt.s32.totalorder %s17, 4
      // Predicated region
      $region45: #{lateral_block_pallas.1} parent=5 // pred_check
        %p330 = pneg %p329
      $region46: #{lateral_block_pallas.1} parent=5 // pred_check_branch
        %332 = sbr.rel (%p330) target = $region48
      $region47: #{lateral_block_pallas.1} parent=5 // pred_region
        // Predicated region
        $region49: #{lateral_block_pallas.1} parent=47 // pred_check
          %p333 = pneg %p93
        $region50: #{lateral_block_pallas.1} parent=47 // pred_check_branch
          %335 = sbr.rel (%p333) target = $region52
        $region51: #{lateral_block_pallas.1} parent=47 // pred_region
          %s336 = smul.u32 2, %s25
          %p337 = scmp.lt.s32.totalorder %s24, 1
          %s338 = scalar_select %p337, %s24, 1
          %p339 = scmp.lt.s32.totalorder %s336, 5
          %s340 = scalar_select %p339, %s336, 5
          %s341 = smul.addr %s338, 6
          %s342 = sadd.s32 %s340, %s341
          %s343 = smul.addr %s342, 4
          %s344 = scalar_lea.vmem %s2, %s343
          %s345 = smul.u32 2, %s25
        $region52: #{lateral_block_pallas.1} parent=47 // pred_fallthru
          _
        // Predicated region
        $region53: #{lateral_block_pallas.1} parent=47 // pred_check
          %p346 = pneg %p123
        $region54: #{lateral_block_pallas.1} parent=47 // pred_check_branch
          %348 = sbr.rel (%p346) target = $region56
        $region55: #{lateral_block_pallas.1} parent=47 // pred_region
          %s349 = sadd.s32 %s25, 1
          %s350 = smul.u32 2, %s349
          %p351 = scmp.lt.s32.totalorder %s24, 1
          %s352 = scalar_select %p351, %s24, 1
          %p353 = scmp.lt.s32.totalorder %s350, 5
          %s354 = scalar_select %p353, %s350, 5
          %s355 = smul.addr %s352, 6
          %s356 = sadd.s32 %s354, %s355
          %s357 = smul.addr %s356, 4
          %s358 = scalar_lea.vmem %s3, %s357
          %s359 = sadd.s32 %s25, 1
          %s360 = smul.u32 2, %s359
        $region56: #{lateral_block_pallas.1} parent=47 // pred_fallthru
          _
      $region48: #{lateral_block_pallas.1} parent=5 // pred_fallthru
        _
      %p361 = scmp.le.s32.totalorder 1, %s17
      %p362 = scmp.lt.s32.totalorder %s17, 5
      %p363 = pnand %p361, %p362
      %p364 = pneg %p363
      // Predicated region
      $region57: #{lateral_block_pallas.1} parent=5 // pred_check
        _
      $region58: #{lateral_block_pallas.1} parent=5 // pred_check_branch
        %366 = sbr.rel (%p363) target = $region60
      $region59: #{lateral_block_pallas.1} parent=5 // pred_region
        %s367 = ssub.s32 %s17, 1
        // Predicated region
        $region61: #{lateral_block_pallas.1} parent=59 // pred_check
          %p368 = pneg %p50
        $region62: #{lateral_block_pallas.1} parent=59 // pred_check_branch
          %370 = sbr.rel (%p368) target = $region64
        $region63: #{lateral_block_pallas.1} parent=59 // pred_region
          %372 = dma.done [#allocation3], 16
        $region64: #{lateral_block_pallas.1} parent=59 // pred_fallthru
          _
        %373 = sfence
        %p374 = pneg %p50
        %p375 = pneg %p47
        %p376 = pneg %p71
        %p377 = pneg %p68
        %s378 = smul.u32 2, %s27
        %p379 = scmp.lt.s32.totalorder %s26, 1
        %s380 = scalar_select %p379, %s26, 1
        %p381 = scmp.lt.s32.totalorder %s378, 5
        %s382 = scalar_select %p381, %s378, 5
        %s383 = smul.addr %s380, 6
        %s384 = sadd.s32 %s382, %s383
        %s385 = smul.addr %s384, 4
        %s386 = scalar_lea.vmem %s2, %s385
        %p387 = pneg %p99
        %p388 = pneg %p96
        %s389 = sadd.s32 %s27, 1
        %s390 = smul.u32 2, %s389
        %p391 = scmp.lt.s32.totalorder %s26, 1
        %s392 = scalar_select %p391, %s26, 1
        %p393 = scmp.lt.s32.totalorder %s390, 5
        %s394 = scalar_select %p393, %s390, 5
        %s395 = smul.addr %s392, 6
        %s396 = sadd.s32 %s394, %s395
        %s397 = smul.addr %s396, 4
        %s398 = scalar_lea.vmem %s3, %s397
        %p399 = pneg %p129
        %p400 = pneg %p126
        %p401 = pneg %p150
        %p402 = pneg %p147
        %p403 = pneg %p171
        %p404 = pneg %p168
        %p405 = pneg %p192
        %p406 = pneg %p189
        %p407 = pneg %p213
        %p408 = pneg %p210
        %p409 = pneg %p234
        %p410 = pneg %p231
        %p411 = pneg %p255
        %p412 = pneg %p252
        %p413 = pneg %p283
        %p414 = pneg %p280
        %s415 = smul.u32 2, %s27
        %p416 = scmp.lt.s32.totalorder %s26, 1
        %s417 = scalar_select %p416, %s26, 1
        %p418 = scmp.lt.s32.totalorder %s415, 3
        %s419 = scalar_select %p418, %s415, 3
        %s420 = smul.addr %s417, 4
        %s421 = sadd.s32 %s419, %s420
        %s422 = smul.addr %s421, 8
        %s423 = scalar_lea.vmem %s10, %s422
        %s424 = smul.u32 2, %s27
        %p425 = scmp.lt.s32.totalorder %s26, 1
        %s426 = scalar_select %p425, %s26, 1
        %p427 = scmp.lt.s32.totalorder %s424, 5
        %s428 = scalar_select %p427, %s424, 5
        %s429 = smul.addr %s426, 6
        %s430 = sadd.s32 %s428, %s429
        %s431 = smul.addr %s430, 4
        %s432 = scalar_lea.vmem %s2, %s431
        %s433 = smul.u32 2, %s27
        %s434 = sadd.s32 %s27, 1
        %s435 = smul.u32 2, %s434
        %p436 = scmp.lt.s32.totalorder %s26, 1
        %s437 = scalar_select %p436, %s26, 1
        %p438 = scmp.lt.s32.totalorder %s435, 5
        %s439 = scalar_select %p438, %s435, 5
        %s440 = smul.addr %s437, 6
        %s441 = sadd.s32 %s439, %s440
        %s442 = smul.addr %s441, 4
        %s443 = scalar_lea.vmem %s3, %s442
        %s444 = sadd.s32 %s27, 1
        %s445 = smul.u32 2, %s444
        %s446 = smul.u32 2, %s27
        %p447 = scmp.lt.s32.totalorder %s26, 1
        %s448 = scalar_select %p447, %s26, 1
        %p449 = scmp.lt.s32.totalorder %s446, 3
        %s450 = scalar_select %p449, %s446, 3
        %s451 = smul.addr %s448, 4
        %s452 = sadd.s32 %s450, %s451
        %s453 = smul.addr %s452, 8
        %s454 = scalar_lea.vmem %s10, %s453
        %s455 = smul.u32 2, %s27
        %v456 = vld [vmem:[%s432] sm:$0xff]
        %v457 = vld [vmem:[%s443] sm:$0xff]
        %459 = vst [vmem:[#allocation1] ss:$2 sm:$0xff] %v456
        %v460 = vld.sshfl [vmem:[#allocation1] sm:$0xff pattern:$0x75316420]
        %v461 = vld.sshfl [vmem:[#allocation1 + $0x8] sm:$0xff pattern:$0x75316420]
        %465 = vst [vmem:[#allocation1] ss:$2 sm:$0xff] %v457
        %v466 = vld.sshfl [vmem:[#allocation1] sm:$0xff pattern:$0x75316420]
        %v467 = vld.sshfl [vmem:[#allocation1 + $0x8] sm:$0xff pattern:$0x75316420]
        %s470 = sld [smem:[#allocation2]]
        %s471 = sld [smem:[#allocation2 + $0x1]]
        %vm472 = vcmp.ge.f32.partialorder %v460, 0.0
        %vm473 = vcmp.ge.f32.partialorder %v461, 0.0
        %vm474 = vcmp.ge.f32.partialorder %v466, 0.0
        %vm475 = vcmp.ge.f32.partialorder %v467, 0.0
        %v476 = vstv %s470
        %v477 = vmul.f32 %v476, %v460
        %v478 = vmul.f32 %v476, %v461
        %v479 = vmul.f32 %v476, %v466
        %v480 = vmul.f32 %v476, %v467
        %v481 = vsel %vm472, %v460, %v477
        %v482 = vsel %vm473, %v461, %v478
        %v483 = vsel %vm474, %v466, %v479
        %v484 = vsel %vm475, %v467, %v480
        %v485 = vld [vmem:[%s4] sm:$0xff]
        %v489 = vrot.slane %v481, 4
        %v490 = vrot.slane %v482, 4
        %v491 = vrot.slane %v483, 4
        %492 = vrot.lane.b32.xlu0 %v489, 127
        %v493 = vpop.permute.xlu0 %492
        %494 = vrot.lane.b32.xlu0 %v490, 127
        %v495 = vpop.permute.xlu0 %494
        %496 = vrot.lane.b32.xlu0 %v491, 127
        %v497 = vpop.permute.xlu0 %496
        %vm498 = vcmask 1039360
        %v499 = vsel %vm498, %v493, %v495
        %v500 = vsel %vm498, %v495, %v497
        %504 = vrot.lane.b32.xlu0 %v481, 126
        %v505 = vpop.permute.xlu0 %504
        %506 = vrot.lane.b32.xlu0 %v482, 126
        %v507 = vpop.permute.xlu0 %506
        %508 = vrot.lane.b32.xlu0 %v483, 126
        %v509 = vpop.permute.xlu0 %508
        %vm510 = vcmask 1031168
        %v511 = vsel %vm510, %v505, %v507
        %v512 = vsel %vm510, %v507, %v509
        %516 = vrot.lane.b32.xlu0 %v489, 96
        %v517 = vpop.permute.xlu0 %516
        %518 = vrot.lane.b32.xlu0 %v490, 96
        %v519 = vpop.permute.xlu0 %518
        %520 = vrot.lane.b32.xlu0 %v491, 96
        %v521 = vpop.permute.xlu0 %520
        %vm522 = vcmask 785408
        %v523 = vsel %vm522, %v517, %v519
        %v524 = vsel %vm522, %v519, %v521
        %529 = vrot.lane.b32.xlu0 %v481, 95
        %v530 = vpop.permute.xlu0 %529
        %531 = vrot.lane.b32.xlu0 %v482, 95
        %v532 = vpop.permute.xlu0 %531
        %533 = vrot.lane.b32.xlu0 %v483, 95
        %v534 = vpop.permute.xlu0 %533
        %535 = vrot.lane.b32.xlu0 %v484, 95
        %v536 = vpop.permute.xlu0 %535
        %vm537 = vcmask 777216
        %v538 = vsel %vm537, %v530, %v532
        %v539 = vsel %vm537, %v532, %v534
        %v540 = vsel %vm537, %v534, %v536
        %v544 = vrot.slane %v484, 4
        %545 = vrot.lane.b32.xlu0 %v489, 94
        %v546 = vpop.permute.xlu0 %545
        %547 = vrot.lane.b32.xlu0 %v490, 94
        %v548 = vpop.permute.xlu0 %547
        %549 = vrot.lane.b32.xlu0 %v491, 94
        %v550 = vpop.permute.xlu0 %549
        %551 = vrot.lane.b32.xlu0 %v544, 94
        %v552 = vpop.permute.xlu0 %551
        %vm553 = vcmask 769024
        %v554 = vsel %vm553, %v546, %v548
        %v555 = vsel %vm553, %v548, %v550
        %v556 = vsel %vm553, %v550, %v552
        %560 = vrot.lane.b32.xlu0 %v481, 64
        %v561 = vpop.permute.xlu0 %560
        %562 = vrot.lane.b32.xlu0 %v482, 64
        %v563 = vpop.permute.xlu0 %562
        %564 = vrot.lane.b32.xlu0 %v483, 64
        %v565 = vpop.permute.xlu0 %564
        %566 = vrot.lane.b32.xlu0 %v484, 64
        %v567 = vpop.permute.xlu0 %566
        %vm568 = vcmask 523264
        %v569 = vsel %vm568, %v561, %v563
        %v570 = vsel %vm568, %v563, %v565
        %v571 = vsel %vm568, %v565, %v567
        %575 = vrot.lane.b32.xlu0 %v489, 63
        %v576 = vpop.permute.xlu0 %575
        %577 = vrot.lane.b32.xlu0 %v490, 63
        %v578 = vpop.permute.xlu0 %577
        %579 = vrot.lane.b32.xlu0 %v491, 63
        %v580 = vpop.permute.xlu0 %579
        %581 = vrot.lane.b32.xlu0 %v544, 63
        %v582 = vpop.permute.xlu0 %581
        %vm583 = vcmask 515072
        %v584 = vsel %vm583, %v576, %v578
        %v585 = vsel %vm583, %v578, %v580
        %v586 = vsel %vm583, %v580, %v582
        %590 = vrot.lane.b32.xlu0 %v481, 62
        %v591 = vpop.permute.xlu0 %590
        %592 = vrot.lane.b32.xlu0 %v482, 62
        %v593 = vpop.permute.xlu0 %592
        %594 = vrot.lane.b32.xlu0 %v483, 62
        %v595 = vpop.permute.xlu0 %594
        %596 = vrot.lane.b32.xlu0 %v484, 62
        %v597 = vpop.permute.xlu0 %596
        %vm598 = vcmask 506880
        %v599 = vsel %vm598, %v591, %v593
        %v600 = vsel %vm598, %v593, %v595
        %v601 = vsel %vm598, %v595, %v597
        %vm602 = vcmask 1043456
        %v603 = vsel %vm602, %v481, %v499
        %v604 = vsel %vm602, %v482, %v500
        %v605 = vsel %vm602, %v483, %v497
        %v606 = vsel %vm602, %v511, %v523
        %v607 = vsel %vm602, %v512, %v524
        %v608 = vsel %vm602, %v509, %v521
        %v609 = vsel %vm602, %v538, %v554
        %v610 = vsel %vm602, %v539, %v555
        %v611 = vsel %vm602, %v540, %v556
        %v612 = vsel %vm602, %v569, %v584
        %v613 = vsel %vm602, %v570, %v585
        %v614 = vsel %vm602, %v571, %v586
        %v615 = vld [vmem:[%s5] sm:$0xff]
        %617 = vset.pattern.permute.xlu0 0
        %618 = vperm.xlu0 %617, %v615
        %v619 = vpop.permute.xlu0 %618
        %vm621 = vcmask 293888
        %v623 = vsel %vm621, %v485, 0
        %v625 = vsel %vm602, %v599, 0
        %v627 = vsel %vm602, %v600, 0
        %v629 = vsel %vm602, %v601, 0
        %631 = vmatpush.msra.mxu0 0.0
        %632 = vmatpush.msra.mxu0 0.0
        %633 = vmatpush.msra.mxu0 0.0
        %634 = vmatpush.msra.mxu0 0.0
        %635 = vmatpush.msra.mxu0 0.0
        %636 = vmatpush.msra.mxu0 0.0
        %637 = vmatpush.msra.mxu0 0.0
        %638 = vmatpush.msra.mxu0 0.0
        %639 = vmatpush.msra.mxu0 0.0
        %640 = vmatpush.msra.mxu0 0.0
        %641 = vmatpush.msra.mxu0 0.0
        %642 = vmatpush.msra.mxu0 %v625
        %643 = vmatpush.msra.mxu0 %v612
        %644 = vmatpush.msra.mxu0 %v609
        %645 = vmatpush.msra.mxu0 %v606
        %646 = vmatpush.msra.mxu0 %v603
        %647 = vmatmul.f32.gmra.mxu0 %v623
        %v648 = vpop.f32.mrf.mxu0
        %v649 = vadd.f32 %v619, %v648
        %650 = vdwg.mxu0
        %651 = vmatpush.msra.mxu0 0.0
        %652 = vmatpush.msra.mxu0 0.0
        %653 = vmatpush.msra.mxu0 0.0
        %654 = vmatpush.msra.mxu0 0.0
        %655 = vmatpush.msra.mxu0 0.0
        %656 = vmatpush.msra.mxu0 0.0
        %657 = vmatpush.msra.mxu0 0.0
        %658 = vmatpush.msra.mxu0 0.0
        %659 = vmatpush.msra.mxu0 0.0
        %660 = vmatpush.msra.mxu0 0.0
        %661 = vmatpush.msra.mxu0 0.0
        %662 = vmatpush.msra.mxu0 %v627
        %663 = vmatpush.msra.mxu0 %v613
        %664 = vmatpush.msra.mxu0 %v610
        %665 = vmatpush.msra.mxu0 %v607
        %666 = vmatpush.msra.mxu0 %v604
        %667 = vmatmul.f32.gmra.mxu0 %v623
        %v668 = vpop.f32.mrf.mxu0
        %v669 = vadd.f32 %v619, %v668
        %670 = vdwg.mxu0
        %671 = vmatpush.msra.mxu0 0.0
        %672 = vmatpush.msra.mxu0 0.0
        %673 = vmatpush.msra.mxu0 0.0
        %674 = vmatpush.msra.mxu0 0.0
        %675 = vmatpush.msra.mxu0 0.0
        %676 = vmatpush.msra.mxu0 0.0
        %677 = vmatpush.msra.mxu0 0.0
        %678 = vmatpush.msra.mxu0 0.0
        %679 = vmatpush.msra.mxu0 0.0
        %680 = vmatpush.msra.mxu0 0.0
        %681 = vmatpush.msra.mxu0 0.0
        %682 = vmatpush.msra.mxu0 %v629
        %683 = vmatpush.msra.mxu0 %v614
        %684 = vmatpush.msra.mxu0 %v611
        %685 = vmatpush.msra.mxu0 %v608
        %686 = vmatpush.msra.mxu0 %v605
        %687 = vmatmul.f32.gmra.mxu0 %v623
        %v688 = vpop.f32.mrf.mxu0
        %v689 = vadd.f32 %v619, %v688
        %690 = vdwg.mxu0
        %vm691 = vcmp.ge.f32.partialorder %v649, 0.0
        %vm692 = vcmp.ge.f32.partialorder %v669, 0.0
        %vm693 = vcmp.ge.f32.partialorder %v689, 0.0
        %v694 = vstv %s471
        %v695 = vmul.f32 %v694, %v649
        %v696 = vmul.f32 %v694, %v669
        %v697 = vmul.f32 %v694, %v689
        %v698 = vsel %vm691, %v649, %v695
        %v699 = vsel %vm692, %v669, %v696
        %v700 = vsel %vm693, %v689, %v697
        %v701 = vld [vmem:[%s1] sm:$0x7]
        %s702 = smul.u32 %s27, 8
        %s703 = ssub.s32 %s702, 1
        %v704 = vstv %s703
        %v705 = vadd.s32 %v701, %v704
        %vm706 = vcmp.ge.s32.totalorder %v705, 0
        %vm707 = vcmp.lt.s32.totalorder %v705, 16
        %vm708 = vmand %vm706, %vm707
        %v709 = vsel %vm708, 1, 0
        %v710 = vperm.slane %v709, 0
        %v711 = vperm.slane %v709, 1
        %v712 = vperm.slane %v709, 2
        %vm713 = vcmp.eq.s32.totalorder %v710, 1
        %vm714 = vcmp.eq.s32.totalorder %v711, 1
        %vm715 = vcmp.eq.s32.totalorder %v712, 1
        %v716 = vsel %vm713, %v698, 0.0
        %v717 = vsel %vm714, %v699, 0.0
        %v718 = vsel %vm715, %v700, 0.0
        %v719 = vld [vmem:[%s6] sm:$0xff]
        %723 = vrot.lane.b32.xlu0 %v716, 127
        %v724 = vpop.permute.xlu0 %723
        %725 = vrot.lane.b32.xlu0 %v717, 127
        %v726 = vpop.permute.xlu0 %725
        %727 = vrot.lane.b32.xlu0 %v718, 127
        %v728 = vpop.permute.xlu0 %727
        %v729 = vsel %vm498, %v724, %v726
        %v730 = vsel %vm498, %v726, %v728
        %733 = vrot.lane.b32.xlu0 %v716, 126
        %v734 = vpop.permute.xlu0 %733
        %735 = vrot.lane.b32.xlu0 %v717, 126
        %v736 = vpop.permute.xlu0 %735
        %737 = vrot.lane.b32.xlu0 %v718, 126
        %v738 = vpop.permute.xlu0 %737
        %v739 = vsel %vm510, %v734, %v736
        %v740 = vsel %vm510, %v736, %v738
        %743 = vrot.lane.b32.xlu0 %v716, 96
        %v744 = vpop.permute.xlu0 %743
        %745 = vrot.lane.b32.xlu0 %v717, 96
        %v746 = vpop.permute.xlu0 %745
        %747 = vrot.lane.b32.xlu0 %v718, 96
        %v748 = vpop.permute.xlu0 %747
        %v749 = vsel %vm522, %v744, %v746
        %v750 = vsel %vm522, %v746, %v748
        %753 = vrot.lane.b32.xlu0 %v716, 95
        %v754 = vpop.permute.xlu0 %753
        %755 = vrot.lane.b32.xlu0 %v717, 95
        %v756 = vpop.permute.xlu0 %755
        %757 = vrot.lane.b32.xlu0 %v718, 95
        %v758 = vpop.permute.xlu0 %757
        %v759 = vsel %vm537, %v754, %v756
        %v760 = vsel %vm537, %v756, %v758
        %763 = vrot.lane.b32.xlu0 %v716, 94
        %v764 = vpop.permute.xlu0 %763
        %765 = vrot.lane.b32.xlu0 %v717, 94
        %v766 = vpop.permute.xlu0 %765
        %767 = vrot.lane.b32.xlu0 %v718, 94
        %v768 = vpop.permute.xlu0 %767
        %v769 = vsel %vm553, %v764, %v766
        %v770 = vsel %vm553, %v766, %v768
        %773 = vrot.lane.b32.xlu0 %v716, 64
        %v774 = vpop.permute.xlu0 %773
        %775 = vrot.lane.b32.xlu0 %v717, 64
        %v776 = vpop.permute.xlu0 %775
        %777 = vrot.lane.b32.xlu0 %v718, 64
        %v778 = vpop.permute.xlu0 %777
        %v779 = vsel %vm568, %v774, %v776
        %v780 = vsel %vm568, %v776, %v778
        %783 = vrot.lane.b32.xlu0 %v716, 63
        %v784 = vpop.permute.xlu0 %783
        %785 = vrot.lane.b32.xlu0 %v717, 63
        %v786 = vpop.permute.xlu0 %785
        %787 = vrot.lane.b32.xlu0 %v718, 63
        %v788 = vpop.permute.xlu0 %787
        %v789 = vsel %vm583, %v784, %v786
        %v790 = vsel %vm583, %v786, %v788
        %793 = vrot.lane.b32.xlu0 %v716, 62
        %v794 = vpop.permute.xlu0 %793
        %795 = vrot.lane.b32.xlu0 %v717, 62
        %v796 = vpop.permute.xlu0 %795
        %797 = vrot.lane.b32.xlu0 %v718, 62
        %v798 = vpop.permute.xlu0 %797
        %v799 = vsel %vm598, %v794, %v796
        %v800 = vsel %vm598, %v796, %v798
        %v803 = vld [vmem:[%s7] sm:$0xff]
        %805 = vset.pattern.permute.xlu0 0
        %806 = vperm.xlu0 %805, %v803
        %v807 = vpop.permute.xlu0 %806
        %vm809 = vcmask 588800
        %v811 = vsel %vm809, %v719, 0
        %813 = vmatpush.msra.mxu0 0.0
        %814 = vmatpush.msra.mxu0 0.0
        %815 = vmatpush.msra.mxu0 0.0
        %816 = vmatpush.msra.mxu0 0.0
        %817 = vmatpush.msra.mxu0 0.0
        %818 = vmatpush.msra.mxu0 0.0
        %819 = vmatpush.msra.mxu0 0.0
        %820 = vmatpush.msra.mxu0 %v799
        %821 = vmatpush.msra.mxu0 %v789
        %822 = vmatpush.msra.mxu0 %v779
        %823 = vmatpush.msra.mxu0 %v769
        %824 = vmatpush.msra.mxu0 %v759
        %825 = vmatpush.msra.mxu0 %v749
        %826 = vmatpush.msra.mxu0 %v739
        %827 = vmatpush.msra.mxu0 %v729
        %828 = vmatpush.msra.mxu0 %v716
        %829 = vmatmul.f32.gmra.mxu0 %v811
        %v830 = vpop.f32.mrf.mxu0
        %v831 = vadd.f32 %v807, %v830
        %832 = vdwg.mxu0
        %833 = vmatpush.msra.mxu0 0.0
        %834 = vmatpush.msra.mxu0 0.0
        %835 = vmatpush.msra.mxu0 0.0
        %836 = vmatpush.msra.mxu0 0.0
        %837 = vmatpush.msra.mxu0 0.0
        %838 = vmatpush.msra.mxu0 0.0
        %839 = vmatpush.msra.mxu0 0.0
        %840 = vmatpush.msra.mxu0 %v800
        %841 = vmatpush.msra.mxu0 %v790
        %842 = vmatpush.msra.mxu0 %v780
        %843 = vmatpush.msra.mxu0 %v770
        %844 = vmatpush.msra.mxu0 %v760
        %845 = vmatpush.msra.mxu0 %v750
        %846 = vmatpush.msra.mxu0 %v740
        %847 = vmatpush.msra.mxu0 %v730
        %848 = vmatpush.msra.mxu0 %v717
        %849 = vmatmul.f32.gmra.mxu0 %v811
        %v850 = vpop.f32.mrf.mxu0
        %v851 = vadd.f32 %v807, %v850
        %852 = vdwg.mxu0
        %v853 = vld [vmem:[%s8] sm:$0xff]
        %v854 = vrot.slane %v460, 4
        %v855 = vrot.slane %v461, 4
        %v856 = vrot.slane %v466, 4
        %857 = vrot.lane.b32.xlu0 %v854, 127
        %v858 = vpop.permute.xlu0 %857
        %859 = vrot.lane.b32.xlu0 %v855, 127
        %v860 = vpop.permute.xlu0 %859
        %861 = vrot.lane.b32.xlu0 %v856, 127
        %v862 = vpop.permute.xlu0 %861
        %v863 = vsel %vm498, %v858, %v860
        %v864 = vsel %vm498, %v860, %v862
        %868 = vrot.lane.b32.xlu0 %v460, 126
        %v869 = vpop.permute.xlu0 %868
        %870 = vrot.lane.b32.xlu0 %v461, 126
        %v871 = vpop.permute.xlu0 %870
        %872 = vrot.lane.b32.xlu0 %v466, 126
        %v873 = vpop.permute.xlu0 %872
        %v874 = vsel %vm510, %v869, %v871
        %v875 = vsel %vm510, %v871, %v873
        %879 = vrot.lane.b32.xlu0 %v854, 96
        %v880 = vpop.permute.xlu0 %879
        %881 = vrot.lane.b32.xlu0 %v855, 96
        %v882 = vpop.permute.xlu0 %881
        %883 = vrot.lane.b32.xlu0 %v856, 96
        %v884 = vpop.permute.xlu0 %883
        %v885 = vsel %vm522, %v880, %v882
        %v886 = vsel %vm522, %v882, %v884
        %890 = vrot.lane.b32.xlu0 %v460, 95
        %v891 = vpop.permute.xlu0 %890
        %892 = vrot.lane.b32.xlu0 %v461, 95
        %v893 = vpop.permute.xlu0 %892
        %894 = vrot.lane.b32.xlu0 %v466, 95
        %v895 = vpop.permute.xlu0 %894
        %v896 = vsel %vm537, %v891, %v893
        %v897 = vsel %vm537, %v893, %v895
        %901 = vrot.lane.b32.xlu0 %v854, 94
        %v902 = vpop.permute.xlu0 %901
        %903 = vrot.lane.b32.xlu0 %v855, 94
        %v904 = vpop.permute.xlu0 %903
        %905 = vrot.lane.b32.xlu0 %v856, 94
        %v906 = vpop.permute.xlu0 %905
        %v907 = vsel %vm553, %v902, %v904
        %v908 = vsel %vm553, %v904, %v906
        %912 = vrot.lane.b32.xlu0 %v460, 64
        %v913 = vpop.permute.xlu0 %912
        %914 = vrot.lane.b32.xlu0 %v461, 64
        %v915 = vpop.permute.xlu0 %914
        %916 = vrot.lane.b32.xlu0 %v466, 64
        %v917 = vpop.permute.xlu0 %916
        %v918 = vsel %vm568, %v913, %v915
        %v919 = vsel %vm568, %v915, %v917
        %923 = vrot.lane.b32.xlu0 %v854, 63
        %v924 = vpop.permute.xlu0 %923
        %925 = vrot.lane.b32.xlu0 %v855, 63
        %v926 = vpop.permute.xlu0 %925
        %927 = vrot.lane.b32.xlu0 %v856, 63
        %v928 = vpop.permute.xlu0 %927
        %v929 = vsel %vm583, %v924, %v926
        %v930 = vsel %vm583, %v926, %v928
        %934 = vrot.lane.b32.xlu0 %v460, 62
        %v935 = vpop.permute.xlu0 %934
        %936 = vrot.lane.b32.xlu0 %v461, 62
        %v937 = vpop.permute.xlu0 %936
        %938 = vrot.lane.b32.xlu0 %v466, 62
        %v939 = vpop.permute.xlu0 %938
        %v940 = vsel %vm598, %v935, %v937
        %v941 = vsel %vm598, %v937, %v939
        %v942 = vsel %vm602, %v460, %v863
        %v943 = vsel %vm602, %v461, %v864
        %v944 = vsel %vm602, %v466, %v862
        %v945 = vsel %vm602, %v874, %v885
        %v946 = vsel %vm602, %v875, %v886
        %v947 = vsel %vm602, %v873, %v884
        %v948 = vsel %vm602, %v896, %v907
        %v949 = vsel %vm602, %v897, %v908
        %v950 = vsel %vm602, %v895, %v906
        %v951 = vsel %vm602, %v918, %v929
        %v952 = vsel %vm602, %v919, %v930
        %v953 = vsel %vm602, %v917, %v928
        %966 = vrot.lane.b32.xlu0 %v942, 95
        %v967 = vpop.permute.xlu0 %966
        %968 = vrot.lane.b32.xlu0 %v943, 95
        %v969 = vpop.permute.xlu0 %968
        %970 = vrot.lane.b32.xlu0 %v944, 95
        %v971 = vpop.permute.xlu0 %970
        %972 = vrot.lane.b32.xlu0 %v945, 95
        %v973 = vpop.permute.xlu0 %972
        %974 = vrot.lane.b32.xlu0 %v946, 95
        %v975 = vpop.permute.xlu0 %974
        %976 = vrot.lane.b32.xlu0 %v947, 95
        %v977 = vpop.permute.xlu0 %976
        %978 = vrot.lane.b32.xlu0 %v948, 95
        %v979 = vpop.permute.xlu0 %978
        %980 = vrot.lane.b32.xlu0 %v949, 95
        %v981 = vpop.permute.xlu0 %980
        %982 = vrot.lane.b32.xlu0 %v950, 95
        %v983 = vpop.permute.xlu0 %982
        %984 = vrot.lane.b32.xlu0 %v951, 95
        %v985 = vpop.permute.xlu0 %984
        %986 = vrot.lane.b32.xlu0 %v952, 95
        %v987 = vpop.permute.xlu0 %986
        %988 = vrot.lane.b32.xlu0 %v953, 95
        %v989 = vpop.permute.xlu0 %988
        %990 = vrot.lane.b32.xlu0 %v940, 95
        %v991 = vpop.permute.xlu0 %990
        %992 = vrot.lane.b32.xlu0 %v941, 95
        %v993 = vpop.permute.xlu0 %992
        %994 = vrot.lane.b32.xlu0 %v939, 95
        %v995 = vpop.permute.xlu0 %994
        %v996 = vsel %vm537, %v967, %v969
        %v997 = vsel %vm537, %v969, %v971
        %v998 = vsel %vm537, %v973, %v975
        %v999 = vsel %vm537, %v975, %v977
        %v1000 = vsel %vm537, %v979, %v981
        %v1001 = vsel %vm537, %v981, %v983
        %v1002 = vsel %vm537, %v985, %v987
        %v1003 = vsel %vm537, %v987, %v989
        %v1004 = vsel %vm537, %v991, %v993
        %v1005 = vsel %vm537, %v993, %v995
        %v1015 = vsel %vm621, %v853, 0
        %v1017 = vsel %vm602, %v1004, 0
        %v1019 = vsel %vm602, %v1005, 0
        %1021 = vmatpush.msra.mxu0 0.0
        %1022 = vmatpush.msra.mxu0 0.0
        %1023 = vmatpush.msra.mxu0 0.0
        %1024 = vmatpush.msra.mxu0 0.0
        %1025 = vmatpush.msra.mxu0 0.0
        %1026 = vmatpush.msra.mxu0 0.0
        %1027 = vmatpush.msra.mxu0 0.0
        %1028 = vmatpush.msra.mxu0 0.0
        %1029 = vmatpush.msra.mxu0 0.0
        %1030 = vmatpush.msra.mxu0 0.0
        %1031 = vmatpush.msra.mxu0 0.0
        %1032 = vmatpush.msra.mxu0 %v1017
        %1033 = vmatpush.msra.mxu0 %v1002
        %1034 = vmatpush.msra.mxu0 %v1000
        %1035 = vmatpush.msra.mxu0 %v998
        %1036 = vmatpush.msra.mxu0 %v996
        %1037 = vmatmul.f32.gmra.mxu0 %v1015
        %v1038 = vpop.f32.mrf.mxu0
        %v1039 = vadd.f32 0.0, %v1038
        %1040 = vdwg.mxu0
        %1041 = vmatpush.msra.mxu0 0.0
        %1042 = vmatpush.msra.mxu0 0.0
        %1043 = vmatpush.msra.mxu0 0.0
        %1044 = vmatpush.msra.mxu0 0.0
        %1045 = vmatpush.msra.mxu0 0.0
        %1046 = vmatpush.msra.mxu0 0.0
        %1047 = vmatpush.msra.mxu0 0.0
        %1048 = vmatpush.msra.mxu0 0.0
        %1049 = vmatpush.msra.mxu0 0.0
        %1050 = vmatpush.msra.mxu0 0.0
        %1051 = vmatpush.msra.mxu0 0.0
        %1052 = vmatpush.msra.mxu0 %v1019
        %1053 = vmatpush.msra.mxu0 %v1003
        %1054 = vmatpush.msra.mxu0 %v1001
        %1055 = vmatpush.msra.mxu0 %v999
        %1056 = vmatpush.msra.mxu0 %v997
        %1057 = vmatmul.f32.gmra.mxu0 %v1015
        %v1058 = vpop.f32.mrf.mxu0
        %v1059 = vadd.f32 0.0, %v1058
        %1060 = vdwg.mxu0
        %v1061 = vadd.f32 %v831, %v1039
        %v1062 = vadd.f32 %v851, %v1059
        %v1063 = vld [vmem:[%s9] sm:$0xff]
        %1065 = vset.pattern.permute.xlu0 0
        %1066 = vperm.xlu0 %1065, %v1063
        %v1067 = vpop.permute.xlu0 %1066
        %v1069 = vadd.f32 %v1061, %v1067
        %v1070 = vadd.f32 %v1062, %v1067
        %1071 = vst [vmem:[%s454] sm:$0xff] %v1069
        %1072 = vst [vmem:[%s454 + $0x8] sm:$0xff] %v1070
        %s1073 = smul.u32 2, %s27
        %p1074 = scmp.lt.s32.totalorder %s26, 1
        %s1075 = scalar_select %p1074, %s26, 1
        %p1076 = scmp.lt.s32.totalorder %s1073, 3
        %s1077 = scalar_select %p1076, %s1073, 3
        %s1078 = smul.addr %s1075, 4
        %s1079 = sadd.s32 %s1077, %s1078
        %s1080 = smul.addr %s1079, 8
        %s1081 = scalar_lea.vmem %s10, %s1080
        // Predicated region
        $region65: #{lateral_block_pallas.1} parent=59 // pred_check
          %p1082 = pneg %p280
        $region66: #{lateral_block_pallas.1} parent=59 // pred_check_branch
          %1084 = sbr.rel (%p1082) target = $region68
        $region67: #{lateral_block_pallas.1} parent=59 // pred_region
          %s1085 = smul.u32 2, %s27
        $region68: #{lateral_block_pallas.1} parent=59 // pred_fallthru
          _
      $region60: #{lateral_block_pallas.1} parent=5 // pred_fallthru
        _
      %p1086 = scmp.le.s32.totalorder 2, %s17
      // Predicated region
      $region69: #{lateral_block_pallas.1} parent=5 // pred_check
        %p1087 = pneg %p1086
      $region70: #{lateral_block_pallas.1} parent=5 // pred_check_branch
        %1089 = sbr.rel (%p1087) target = $region72
      $region71: #{lateral_block_pallas.1} parent=5 // pred_region
        %s1090 = ssub.s32 %s17, 2
        // Predicated region
        $region73: #{lateral_block_pallas.1} parent=71 // pred_check
          %p1091 = pneg %p286
        $region74: #{lateral_block_pallas.1} parent=71 // pred_check_branch
          %1093 = sbr.rel (%p1091) target = $region76
        $region75: #{lateral_block_pallas.1} parent=71 // pred_region
          %s1094 = smul.u32 2, %s29
          %p1095 = scmp.lt.s32.totalorder %s28, 1
          %s1096 = scalar_select %p1095, %s28, 1
          %p1097 = scmp.lt.s32.totalorder %s1094, 3
          %s1098 = scalar_select %p1097, %s1094, 3
          %s1099 = smul.addr %s1096, 4
          %s1100 = sadd.s32 %s1098, %s1099
          %s1101 = smul.addr %s1100, 8
          %s1102 = scalar_lea.vmem %s10, %s1101
        $region76: #{lateral_block_pallas.1} parent=71 // pred_fallthru
          _
      $region72: #{lateral_block_pallas.1} parent=5 // pred_fallthru
        _
    $region6: #{lateral_block_pallas.1} parent=1 // loop_footer
      %s21 = sadd.s32 1, %s17
    $region7: #{lateral_block_pallas.1} parent=1 // loop_footer_branch
      %16 = sbr.rel target = $region3
    $region8: #{lateral_block_pallas.1} parent=1 // loop_exit
      _
    %1103 = vsyncpa [#allocation3], 1
    %s1104 = scalar_lea.sflag [#allocation3], 1
    %1105 = vsyncpa %s1104, 1

</llo_original>
